<compile_context>
chip_gen: v5e
topology: v5e:2x2
jax: 0.10.0
libtpu: 0.0.40
codegen_flags: <defaults>
</compile_context>

<pallas_src>
import functools
import math

import numpy as np
import jax
import jax.numpy as jnp
from jax import lax
from jax.experimental import pallas as pl
from jax.experimental.pallas import tpu as pltpu

SQRT2 = math.sqrt(2.0)
LRELU_ALPHA = 0.2


def _lrelu_gain(y):
    # reference-side leaky_relu(0.2) followed by the StyleGAN activation gain sqrt(2)
    return jnp.where(y >= 0, y, LRELU_ALPHA * y) * SQRT2


def _enc_from_rgb_kernel(x_ref, m_ref, w0_ref, b0_ref, w1_ref, b1_ref, o_ref, *,
                         wp, w_out, th, direct_nchw):
    """Fused conv0(1x1)+lrelu -> conv1(3x3, pad=1)+lrelu for one (batch, row-tile).

    Channel-major, flattened-pixel layout (pixels on the lane axis):
      x_ref : (1, 1, Cin, NPIX_IN)  f32   haloed input row tile
      m_ref : (1, 1, NPIX_IN)       f32   1.0 inside the image, 0.0 on the zero-pad ring
      w0_ref: (Cout, Cin)           f32   conv0 weight (already * weight_gain)
      b0_ref: (Cout, 1)             f32
      w1_ref: (3, Cout, 3*Cout)     bf16  conv1 weight, [dy, o, dx*Cout + c] (gains folded in)
      b1_ref: (Cout, 1)             f32
      o_ref : direct_nchw -> (1, Cout, th, W)       NCHW block, stored row by row
              else        -> (1, 1, Cout, th*(W+2)) wide block; junk cols dropped in wrapper
    """
    cin = x_ref.shape[2]
    cout = w0_ref.shape[0]
    npixw = th * wp

    x = x_ref[0, 0]                       # (Cin, NPIX_IN)
    w0 = w0_ref[...]                      # (Cout, Cin)
    m = m_ref[0]                          # (1, NPIX_IN)  inside-image mask

    # ---- conv0: Cin is tiny -> a few VPU scaled adds instead of a degenerate MXU matmul.
    z = w0[:, 0:1] * x[0:1, :]
    for c in range(1, cin):
        z = z + w0[:, c:c + 1] * x[c:c + 1, :]
    z = z + b0_ref[...]
    # lrelu (its sqrt(2) gain is folded into w1) fused with conv1's zero-pad mask:
    #   lrelu(z) * m == where(z >= 0, m, alpha * m) * z      (3 full-tile VPU ops)
    y0 = (jnp.where(z >= 0, m, LRELU_ALPHA * m) * z).astype(jnp.bfloat16)

    # ---- conv1: per dy, concatenate the 3 dx-shifted views (contiguous lane slices of the
    # flat pixel axis) and run one K=3*Cout MXU matmul.  MXU util is <5% at Cout=32, so keep
    # the 3 small dots (XLU shift/concat work overlaps MXU pushes) rather than one K=288 dot.
    acc = jnp.zeros((cout, npixw), jnp.float32)
    for dy in range(3):
        base = dy * wp
        patch = jnp.concatenate(
            [y0[:, base + dx: base + dx + npixw] for dx in range(3)], axis=0)
        acc = acc + jnp.dot(w1_ref[dy], patch, preferred_element_type=jnp.float32)

    out = acc + b1_ref[...]
    out = (jnp.where(out >= 0, SQRT2, LRELU_ALPHA * SQRT2) * out).astype(o_ref.dtype)

    if direct_nchw:
        # Store NCHW straight to HBM (no XLA epilogue / extra HBM round trip over the
        # 8x-larger output): one lane slice + row store per tile row.
        for r in range(th):
            o_ref[0, :, r, :] = out[:, r * wp: r * wp + w_out]
    else:
        o_ref[0, 0] = out


def _vmem_capacity_bytes():
    try:
        cap = getattr(pltpu.get_tpu_info(), "vmem_capacity_bytes", None)
        if cap:
            return int(cap)
    except Exception:
        pass
    return 128 * 1024 * 1024


def _vmem_budget():
    """Return (vmem_limit_bytes, f32-output bytes targeted per row tile) per generation."""
    cap = _vmem_capacity_bytes()
    if cap <= 80 * 1024 * 1024:                        # v7x-class: 64 MiB per TensorCore
        return 48 * 1024 * 1024, int(2.5 * 1024 * 1024)
    return 96 * 1024 * 1024, 8 * 1024 * 1024           # v5e / v6e: 128 MiB VMEM


def _auto_tile_h(B, H, W, cout, tile_target_bytes):
    wp = W + 2
    th = max(1, int(tile_target_bytes) // max(1, wp * cout * 4))
    th = min(th, H)
    if th >= 8:
        th = (th // 8) * 8                             # clean sublane tiling for the NCHW store
    # v7x has 2 TensorCores: keep at least 2 grid steps so megacore sharding has work.
    if th > 8 and B * ((H + th - 1) // th) < 2:
        th = max(8, (th // 2) // 8 * 8)
    return th


def enc_from_rgb_forward(x_nchw, params, tile_h=None, out_dtype=jnp.float32):
    """EncFromRGB.forward (activation='lrelu'). NCHW in / NCHW out, like the PyTorch module."""
    B, Cin, H, W = x_nchw.shape
    w0, b0, w1, b1 = params["w0"], params["b0"], params["w1"], params["b1"]
    Cout = w0.shape[0]
    assert w0.shape[1] == Cin and w1.shape == (Cout, Cout, 3, 3)

    vmem_limit, tile_target = _vmem_budget()
    th = _auto_tile_h(B, H, W, Cout, tile_target) if tile_h is None else max(1, int(tile_h))

    nt = (H + th - 1) // th
    Hp = nt * th                                       # padded height (extra rows masked+dropped)
    wp = W + 2
    npix_h = (th + 2) * wp                             # haloed pixels per tile
    npix_in = ((npix_h + 2 + 127) // 128) * 128        # slack for the (dy=2, dx=2) tap slice
    npixw = th * wp                                    # "wide" output pixels per tile

    # Store NCHW directly from the kernel when the output block tiles cleanly.
    direct_nchw = (W % 128 == 0) and (th % 8 == 0)

    # ---- scale/repack weights (cheap, wrapper-side).  conv0's sqrt(2) activation gain is
    # folded into w1 (conv1 is linear in its input and the mask is 0/1) -> saves a full-tile mul.
    w0cm = (w0[:, :, 0, 0] * (1.0 / math.sqrt(Cin))).astype(jnp.float32)             # (Cout, Cin)
    w1s = w1 * (SQRT2 / math.sqrt(Cout * 9))                                          # (Co,Ci,3,3)
    w1cm = jnp.transpose(w1s, (2, 0, 3, 1)).reshape(3, Cout, 3 * Cout).astype(jnp.bfloat16)
    b0c = b0.reshape(Cout, 1).astype(jnp.float32)
    b1c = b1.reshape(Cout, 1).astype(jnp.float32)

    # ---- haloed, channel-major, pixel-flattened row tiles (one cheap pass over Cin=4 data)
    # TODO(synk): replace wrapper-side halo duplication with an in-kernel haloed DMA
    # (memory_space=pl.ANY + make_async_copy) to avoid duplicating halo rows in HBM.
    xp = jnp.pad(x_nchw, ((0, 0), (0, 0), (1, 1 + Hp - H), (1, 1)))                  # (B,Cin,Hp+2,W+2)
    tiles = jnp.stack([xp[:, :, t * th: t * th + th + 2, :] for t in range(nt)], axis=1)
    x_flat = tiles.reshape(B, nt, Cin, npix_h)
    x_flat = jnp.pad(x_flat, ((0, 0), (0, 0), (0, 0), (0, npix_in - npix_h)))

    # ---- static inside-image mask per tile (reproduces conv1's zero padding exactly,
    # including the rows added by padding H up to Hp; also kills any conv0-bias leak).
    mask = np.zeros((nt, 1, npix_in), np.float32)
    col_ok = np.zeros((wp,), np.float32)
    col_ok[1:W + 1] = 1.0
    for t in range(nt):
        rows = t * th + np.arange(th + 2)              # padded-image row indices
        row_ok = ((rows >= 1) & (rows <= H)).astype(np.float32)
        mask[t, 0, :npix_h] = (row_ok[:, None] * col_ok[None, :]).reshape(-1)
    mask = jnp.asarray(mask)

    if direct_nchw:
        out_shape = jax.ShapeDtypeStruct((B, Cout, Hp, W), out_dtype)
        out_spec = pl.BlockSpec((1, Cout, th, W), lambda b, t: (b, 0, t, 0))
    else:
        out_shape = jax.ShapeDtypeStruct((B, nt, Cout, npixw), out_dtype)
        out_spec = pl.BlockSpec((1, 1, Cout, npixw), lambda b, t: (b, t, 0, 0))

    kernel = functools.partial(_enc_from_rgb_kernel, wp=wp, w_out=W, th=th,
                               direct_nchw=direct_nchw)
    out = pl.pallas_call(
        kernel,
        out_shape=out_shape,
        grid=(B, nt),
        in_specs=[
            pl.BlockSpec((1, 1, Cin, npix_in), lambda b, t: (b, t, 0, 0)),
            pl.BlockSpec((1, 1, npix_in), lambda b, t: (t, 0, 0)),
            pl.BlockSpec((Cout, Cin), lambda b, t: (0, 0)),
            pl.BlockSpec((Cout, 1), lambda b, t: (0, 0)),
            pl.BlockSpec((3, Cout, 3 * Cout), lambda b, t: (0, 0, 0)),
            pl.BlockSpec((Cout, 1), lambda b, t: (0, 0)),
        ],
        out_specs=out_spec,
        compiler_params=pltpu.CompilerParams(
            dimension_semantics=("parallel", "parallel"),
            vmem_limit_bytes=vmem_limit,
        ),
    )(x_flat, mask, w0cm, b0c, w1cm, b1c)

    if direct_nchw:
        return out if Hp == H else out[:, :, :H, :]

    # Fallback epilogue (W not a multiple of 128): drop the 2 junk columns per wide row,
    # un-tile and return to NCHW.
    out = out.reshape(B, nt, Cout, th, wp)[:, :, :, :, :W]
    out = jnp.transpose(out, (0, 2, 1, 3, 4)).reshape(B, Cout, Hp, W)
    return out if Hp == H else out[:, :, :H, :]


def enc_from_rgb_reference(x_nchw, params):
    """Pure-JAX f32 reference (mirrors the PyTorch conv2d_resample + bias_act path)."""
    w0, b0, w1, b1 = params["w0"], params["b0"], params["w1"], params["b1"]
    Cout, Cin = w0.shape[0], w0.shape[1]
    x = jnp.transpose(x_nchw, (0, 2, 3, 1))                                      # NHWC
    y = jnp.einsum("bhwc,oc->bhwo", x, w0[:, :, 0, 0] * (1.0 / math.sqrt(Cin))) + b0
    y = _lrelu_gain(y)
    w1h = jnp.transpose(w1, (2, 3, 1, 0)) * (1.0 / math.sqrt(Cout * 9))          # HWIO
    y = lax.conv_general_dilated(
        y, w1h, window_strides=(1, 1), padding=((1, 1), (1, 1)),
        dimension_numbers=("NHWC", "HWIO", "NHWC")) + b1
    y = _lrelu_gain(y)
    return jnp.transpose(y, (0, 3, 1, 2))                                        # NCHW


if __name__ == "__main__":
    # EncFromRGB(in_channels=4, out_channels=32, activation='lrelu').
    Cin, Cout = 4, 32
    key = jax.random.PRNGKey(0)
    kx1, kx2, kx3, kw0, kb0, kw1, kb1 = jax.random.split(key, 7)

    params = {
        "w0": jax.random.normal(kw0, (Cout, Cin, 1, 1), dtype=jnp.float32),      # torch layout
        "b0": 0.1 * jax.random.normal(kb0, (Cout,), dtype=jnp.float32),
        "w1": jax.random.normal(kw1, (Cout, Cout, 3, 3), dtype=jnp.float32),     # torch layout
        "b1": 0.1 * jax.random.normal(kb1, (Cout,), dtype=jnp.float32),
    }

    cases = [
        # (input, tile_h, label)
        (jax.random.normal(kx1, (2, Cin, 16, 16), jnp.float32), 8,
         "wide path, cross-tile halo"),
        (jax.random.normal(kx2, (1, Cin, 16, 128), jnp.float32), None,
         "direct NCHW store (W % 128 == 0), auto tiling + megacore split"),
        (jax.random.normal(kx3, (1, Cin, 12, 16), jnp.float32), 8,
         "padded-H ragged last tile"),
    ]

    for x, th, label in cases:
        fwd = jax.jit(functools.partial(enc_from_rgb_forward, tile_h=th))
        out = jax.block_until_ready(fwd(x, params))
        ref = enc_from_rgb_reference(x, params)
        assert out.shape == ref.shape, (label, out.shape, ref.shape)
        max_err = float(jnp.max(jnp.abs(out - ref)))
        assert jnp.allclose(out, ref, atol=5e-2, rtol=5e-2), (
            f"{label}: mismatch vs reference (max abs err {max_err})")

    print("KERNEL_OK")
</pallas_src>

<mosaic_0001>
module attributes {stable_mosaic.version = 11 : i64} {
  func.func @_enc_from_rgb_kernel(%arg0: i32, %arg1: i32, %arg2: memref<1x1x4x256xf32, #tpu.memory_space<vmem>>, %arg3: memref<1x1x256xf32, #tpu.memory_space<vmem>>, %arg4: memref<32x4xf32, #tpu.memory_space<vmem>>, %arg5: memref<32x1xf32, #tpu.memory_space<vmem>>, %arg6: memref<3x32x96xbf16, #tpu.memory_space<vmem>>, %arg7: memref<32x1xf32, #tpu.memory_space<vmem>>, %arg8: memref<1x1x32x144xf32, #tpu.memory_space<vmem>>) attributes {dimension_semantics = [#tpu.dimension_semantics<parallel>, #tpu.dimension_semantics<parallel>], iteration_bounds = array<i64: 2, 2>, scalar_prefetch = 0 : i64, scratch_operands = 0 : i64, tpu.core_type = #tpu.core_type<tc>, window_params = [{transform_indices = @transform_0, window_bounds = array<i64: 1, 1, 4, 256>}, {transform_indices = @transform_1, window_bounds = array<i64: 1, 1, 256>}, {pipeline_mode = #tpu.pipeline_mode<synchronous>, transform_indices = @transform_2, window_bounds = array<i64: 32, 4>}, {pipeline_mode = #tpu.pipeline_mode<synchronous>, transform_indices = @transform_3, window_bounds = array<i64: 32, 1>}, {pipeline_mode = #tpu.pipeline_mode<synchronous>, transform_indices = @transform_4, window_bounds = array<i64: 3, 32, 96>}, {pipeline_mode = #tpu.pipeline_mode<synchronous>, transform_indices = @transform_5, window_bounds = array<i64: 32, 1>}, {transform_indices = @transform_6, window_bounds = array<i64: 1, 1, 32, 144>}]} {
    %c0 = arith.constant 0 : index
    %c0_0 = arith.constant 0 : index
    %c0_1 = arith.constant 0 : index
    %c0_2 = arith.constant 0 : index
    %0 = vector.load %arg2[%c0, %c0_0, %c0_1, %c0_2] : memref<1x1x4x256xf32, #tpu.memory_space<vmem>>, vector<1x1x4x256xf32>
    %1 = vector.shape_cast %0 : vector<1x1x4x256xf32> to vector<4x256xf32>
    %c0_3 = arith.constant 0 : index
    %c0_4 = arith.constant 0 : index
    %2 = vector.load %arg4[%c0_3, %c0_4] : memref<32x4xf32, #tpu.memory_space<vmem>>, vector<32x4xf32>
    %c0_5 = arith.constant 0 : index
    %c0_6 = arith.constant 0 : index
    %c0_7 = arith.constant 0 : index
    %3 = vector.load %arg3[%c0_5, %c0_6, %c0_7] : memref<1x1x256xf32, #tpu.memory_space<vmem>>, vector<1x1x256xf32>
    %4 = vector.shape_cast %3 : vector<1x1x256xf32> to vector<1x256xf32>
    %5 = vector.extract_strided_slice %2 {offsets = [0, 0], sizes = [32, 1], strides = [1, 1]} : vector<32x4xf32> to vector<32x1xf32>
    %6 = vector.extract_strided_slice %1 {offsets = [0, 0], sizes = [1, 256], strides = [1, 1]} : vector<4x256xf32> to vector<1x256xf32>
    %7 = vector.broadcast %5 : vector<32x1xf32> to vector<32x256xf32>
    %8 = vector.broadcast %6 : vector<1x256xf32> to vector<32x256xf32>
    %9 = arith.mulf %7, %8 : vector<32x256xf32>
    %10 = vector.extract_strided_slice %2 {offsets = [0, 1], sizes = [32, 1], strides = [1, 1]} : vector<32x4xf32> to vector<32x1xf32>
    %11 = vector.extract_strided_slice %1 {offsets = [1, 0], sizes = [1, 256], strides = [1, 1]} : vector<4x256xf32> to vector<1x256xf32>
    %12 = vector.broadcast %10 : vector<32x1xf32> to vector<32x256xf32>
    %13 = vector.broadcast %11 : vector<1x256xf32> to vector<32x256xf32>
    %14 = arith.mulf %12, %13 : vector<32x256xf32>
    %15 = arith.addf %9, %14 : vector<32x256xf32>
    %16 = vector.extract_strided_slice %2 {offsets = [0, 2], sizes = [32, 1], strides = [1, 1]} : vector<32x4xf32> to vector<32x1xf32>
    %17 = vector.extract_strided_slice %1 {offsets = [2, 0], sizes = [1, 256], strides = [1, 1]} : vector<4x256xf32> to vector<1x256xf32>
    %18 = vector.broadcast %16 : vector<32x1xf32> to vector<32x256xf32>
    %19 = vector.broadcast %17 : vector<1x256xf32> to vector<32x256xf32>
    %20 = arith.mulf %18, %19 : vector<32x256xf32>
    %21 = arith.addf %15, %20 : vector<32x256xf32>
    %22 = vector.extract_strided_slice %2 {offsets = [0, 3], sizes = [32, 1], strides = [1, 1]} : vector<32x4xf32> to vector<32x1xf32>
    %23 = vector.extract_strided_slice %1 {offsets = [3, 0], sizes = [1, 256], strides = [1, 1]} : vector<4x256xf32> to vector<1x256xf32>
    %24 = vector.broadcast %22 : vector<32x1xf32> to vector<32x256xf32>
    %25 = vector.broadcast %23 : vector<1x256xf32> to vector<32x256xf32>
    %26 = arith.mulf %24, %25 : vector<32x256xf32>
    %27 = arith.addf %21, %26 : vector<32x256xf32>
    %c0_8 = arith.constant 0 : index
    %c0_9 = arith.constant 0 : index
    %28 = vector.load %arg5[%c0_8, %c0_9] : memref<32x1xf32, #tpu.memory_space<vmem>>, vector<32x1xf32>
    %29 = vector.broadcast %28 : vector<32x1xf32> to vector<32x256xf32>
    %30 = arith.addf %27, %29 : vector<32x256xf32>
    %cst = arith.constant 0.000000e+00 : f32
    %31 = vector.broadcast %cst : f32 to vector<32x256xf32>
    %32 = arith.cmpf oge, %30, %31 : vector<32x256xf32>
    %cst_10 = arith.constant 2.000000e-01 : f32
    %33 = vector.broadcast %cst_10 : f32 to vector<1x256xf32>
    %34 = arith.mulf %33, %4 : vector<1x256xf32>
    %35 = vector.shape_cast %4 : vector<1x256xf32> to vector<1x256xf32>
    %36 = vector.broadcast %35 : vector<1x256xf32> to vector<32x256xf32>
    %37 = vector.shape_cast %34 : vector<1x256xf32> to vector<1x256xf32>
    %38 = vector.broadcast %37 : vector<1x256xf32> to vector<32x256xf32>
    %39 = arith.select %32, %36, %38 : vector<32x256xi1>, vector<32x256xf32>
    %40 = arith.mulf %39, %30 : vector<32x256xf32>
    %41 = arith.truncf %40 : vector<32x256xf32> to vector<32x256xbf16>
    %cst_11 = arith.constant 0.000000e+00 : f32
    %42 = vector.broadcast %cst_11 : f32 to vector<32x144xf32>
    %43 = vector.extract_strided_slice %41 {offsets = [0, 0], sizes = [32, 144], strides = [1, 1]} : vector<32x256xbf16> to vector<32x144xbf16>
    %44 = vector.extract_strided_slice %41 {offsets = [0, 1], sizes = [32, 144], strides = [1, 1]} : vector<32x256xbf16> to vector<32x144xbf16>
    %45 = vector.extract_strided_slice %41 {offsets = [0, 2], sizes = [32, 144], strides = [1, 1]} : vector<32x256xbf16> to vector<32x144xbf16>
    %46 = tpu.concatenate %43, %44, %45 in 0 : vector<32x144xbf16>, vector<32x144xbf16>, vector<32x144xbf16> -> vector<96x144xbf16>
    %c0_12 = arith.constant 0 : index
    %c0_13 = arith.constant 0 : index
    %c0_14 = arith.constant 0 : index
    %47 = vector.load %arg6[%c0_12, %c0_13, %c0_14] : memref<3x32x96xbf16, #tpu.memory_space<vmem>>, vector<1x32x96xbf16>
    %48 = vector.shape_cast %47 : vector<1x32x96xbf16> to vector<32x96xbf16>
    %cst_15 = arith.constant dense<0.000000e+00> : vector<32x144xf32>
    %49 = tpu.matmul %48, %46, %cst_15 {dimension_numbers = #tpu.dot_dimension_numbers<[1], [0], [0], [1], [0, 0, 1, 1], [], []>} : vector<32x96xbf16>, vector<96x144xbf16>, vector<32x144xf32> -> vector<32x144xf32>
    %50 = arith.addf %42, %49 : vector<32x144xf32>
    %51 = vector.extract_strided_slice %41 {offsets = [0, 18], sizes = [32, 144], strides = [1, 1]} : vector<32x256xbf16> to vector<32x144xbf16>
    %52 = vector.extract_strided_slice %41 {offsets = [0, 19], sizes = [32, 144], strides = [1, 1]} : vector<32x256xbf16> to vector<32x144xbf16>
    %53 = vector.extract_strided_slice %41 {offsets = [0, 20], sizes = [32, 144], strides = [1, 1]} : vector<32x256xbf16> to vector<32x144xbf16>
    %54 = tpu.concatenate %51, %52, %53 in 0 : vector<32x144xbf16>, vector<32x144xbf16>, vector<32x144xbf16> -> vector<96x144xbf16>
    %c1 = arith.constant 1 : index
    %c0_16 = arith.constant 0 : index
    %c0_17 = arith.constant 0 : index
    %55 = vector.load %arg6[%c1, %c0_16, %c0_17] : memref<3x32x96xbf16, #tpu.memory_space<vmem>>, vector<1x32x96xbf16>
    %56 = vector.shape_cast %55 : vector<1x32x96xbf16> to vector<32x96xbf16>
    %cst_18 = arith.constant dense<0.000000e+00> : vector<32x144xf32>
    %57 = tpu.matmul %56, %54, %cst_18 {dimension_numbers = #tpu.dot_dimension_numbers<[1], [0], [0], [1], [0, 0, 1, 1], [], []>} : vector<32x96xbf16>, vector<96x144xbf16>, vector<32x144xf32> -> vector<32x144xf32>
    %58 = arith.addf %50, %57 : vector<32x144xf32>
    %59 = vector.extract_strided_slice %41 {offsets = [0, 36], sizes = [32, 144], strides = [1, 1]} : vector<32x256xbf16> to vector<32x144xbf16>
    %60 = vector.extract_strided_slice %41 {offsets = [0, 37], sizes = [32, 144], strides = [1, 1]} : vector<32x256xbf16> to vector<32x144xbf16>
    %61 = vector.extract_strided_slice %41 {offsets = [0, 38], sizes = [32, 144], strides = [1, 1]} : vector<32x256xbf16> to vector<32x144xbf16>
    %62 = tpu.concatenate %59, %60, %61 in 0 : vector<32x144xbf16>, vector<32x144xbf16>, vector<32x144xbf16> -> vector<96x144xbf16>
    %c2 = arith.constant 2 : index
    %c0_19 = arith.constant 0 : index
    %c0_20 = arith.constant 0 : index
    %63 = vector.load %arg6[%c2, %c0_19, %c0_20] : memref<3x32x96xbf16, #tpu.memory_space<vmem>>, vector<1x32x96xbf16>
    %64 = vector.shape_cast %63 : vector<1x32x96xbf16> to vector<32x96xbf16>
    %cst_21 = arith.constant dense<0.000000e+00> : vector<32x144xf32>
    %65 = tpu.matmul %64, %62, %cst_21 {dimension_numbers = #tpu.dot_dimension_numbers<[1], [0], [0], [1], [0, 0, 1, 1], [], []>} : vector<32x96xbf16>, vector<96x144xbf16>, vector<32x144xf32> -> vector<32x144xf32>
    %66 = arith.addf %58, %65 : vector<32x144xf32>
    %c0_22 = arith.constant 0 : index
    %c0_23 = arith.constant 0 : index
    %67 = vector.load %arg7[%c0_22, %c0_23] : memref<32x1xf32, #tpu.memory_space<vmem>>, vector<32x1xf32>
    %68 = vector.broadcast %67 : vector<32x1xf32> to vector<32x144xf32>
    %69 = arith.addf %66, %68 : vector<32x144xf32>
    %cst_24 = arith.constant 0.000000e+00 : f32
    %70 = vector.broadcast %cst_24 : f32 to vector<32x144xf32>
    %71 = arith.cmpf oge, %69, %70 : vector<32x144xf32>
    %cst_25 = arith.constant 1.41421354 : f32
    %cst_26 = arith.constant 0.282842726 : f32
    %72 = vector.broadcast %cst_25 : f32 to vector<32x144xf32>
    %73 = vector.broadcast %cst_26 : f32 to vector<32x144xf32>
    %74 = arith.select %71, %72, %73 : vector<32x144xi1>, vector<32x144xf32>
    %75 = arith.mulf %74, %69 : vector<32x144xf32>
    %c0_27 = arith.constant 0 : index
    %c0_28 = arith.constant 0 : index
    %c0_29 = arith.constant 0 : index
    %c0_30 = arith.constant 0 : index
    %76 = vector.load %arg8[%c0_27, %c0_28, %c0_29, %c0_30] : memref<1x1x32x144xf32, #tpu.memory_space<vmem>>, vector<1x1x32x144xf32>
    %77 = vector.shape_cast %76 : vector<1x1x32x144xf32> to vector<32x144xf32>
    %78 = vector.shape_cast %75 : vector<32x144xf32> to vector<1x1x32x144xf32>
    tpu.vector_store %arg8[%c0_27, %c0_28, %c0_29, %c0_30], %78 {strides = array<i32>} : memref<1x1x32x144xf32, #tpu.memory_space<vmem>>, vector<1x1x32x144xf32>,
    return
  }
  func.func @transform_0(%arg0: i32, %arg1: i32) -> (i32, i32, i32, i32) {
    %c0_i32 = arith.constant 0 : i32
    %c0_i32_0 = arith.constant 0 : i32
    %c0_i32_1 = arith.constant 0 : i32
    return %arg0, %arg1, %c0_i32, %c0_i32_0 : i32, i32, i32, i32
  }
  func.func @transform_1(%arg0: i32, %arg1: i32) -> (i32, i32, i32) {
    %c0_i32 = arith.constant 0 : i32
    %c0_i32_0 = arith.constant 0 : i32
    %c0_i32_1 = arith.constant 0 : i32
    return %arg1, %c0_i32, %c0_i32_0 : i32, i32, i32
  }
  func.func @transform_2(%arg0: i32, %arg1: i32) -> (i32, i32) {
    %c0_i32 = arith.constant 0 : i32
    %c0_i32_0 = arith.constant 0 : i32
    %c0_i32_1 = arith.constant 0 : i32
    return %c0_i32, %c0_i32_0 : i32, i32
  }
  func.func @transform_3(%arg0: i32, %arg1: i32) -> (i32, i32) {
    %c0_i32 = arith.constant 0 : i32
    %c0_i32_0 = arith.constant 0 : i32
    %c0_i32_1 = arith.constant 0 : i32
    return %c0_i32, %c0_i32_0 : i32, i32
  }
  func.func @transform_4(%arg0: i32, %arg1: i32) -> (i32, i32, i32) {
    %c0_i32 = arith.constant 0 : i32
    %c0_i32_0 = arith.constant 0 : i32
    %c0_i32_1 = arith.constant 0 : i32
    %c0_i32_2 = arith.constant 0 : i32
    return %c0_i32, %c0_i32_0, %c0_i32_1 : i32, i32, i32
  }
  func.func @transform_5(%arg0: i32, %arg1: i32) -> (i32, i32) {
    %c0_i32 = arith.constant 0 : i32
    %c0_i32_0 = arith.constant 0 : i32
    %c0_i32_1 = arith.constant 0 : i32
    return %c0_i32, %c0_i32_0 : i32, i32
  }
  func.func @transform_6(%arg0: i32, %arg1: i32) -> (i32, i32, i32, i32) {
    %c0_i32 = arith.constant 0 : i32
    %c0_i32_0 = arith.constant 0 : i32
    %c0_i32_1 = arith.constant 0 : i32
    return %arg0, %arg1, %c0_i32, %c0_i32_0 : i32, i32, i32, i32
  }
}

</mosaic_0001>

<llo_original>
// kernel: enc_from_rgb_forward.1
$region0: #{enc_from_rgb_forward.1}
  #allocation0 [shape = 'u32[]', space=smem, size = 0x4, offset = 0x4, fixed_abs, tag = 'smem constant byte address 0x4 - core index']
  #allocation1 [shape = 'u32[72,128]{1,0:T(1,128)}', space=vmem, size = 0x9000, scoped, tag = 'internal scratch']
  %s0 = inlined_call_operand.vmem [shape: f32[2,2,4,256], index: 0, kind: input, shape index: {}]
  %s1 = inlined_call_operand.vmem [shape: f32[2,1,256], index: 1, kind: input, shape index: {}]
  %s2 = inlined_call_operand.vmem [shape: f32[32,4], index: 2, kind: input, shape index: {}]
  %s3 = inlined_call_operand.vmem [shape: f32[32,1], index: 3, kind: input, shape index: {}]
  %s4 = inlined_call_operand.vmem [shape: bf16[3,32,96], index: 4, kind: input, shape index: {}]
  %s5 = inlined_call_operand.vmem [shape: f32[32,1], index: 5, kind: input, shape index: {}]
  %s6 = inlined_call_operand.vmem [shape: f32[2,2,32,144], index: 6, kind: output, shape index: {}]
  %s7 = sld [smem:[#allocation0]]
  $region57: #{enc_from_rgb_forward.1} parent=0
    _
  %s9 = ssub.s32 1, %s7
  %s10 = scalar_select 0, %s9, %s7
  loop: start=0, step=1, limit=6
  $region2: #{enc_from_rgb_forward.1} parent=0 // loop_pre_header
    _
  $region3: #{enc_from_rgb_forward.1} parent=0 // loop_header
    %s12 = sphi 0, %s16
    %p13 = scmp.ge.s32.totalorder %s12, 6
    %s19 = sphi 0, %s31
    %s20 = sphi 0, %s27
    %s21 = sphi 0, %s19
    %s22 = sphi 0, %s20
    %s23 = sphi 0, %s21
    %s24 = sphi 0, %s22
    %s36 = sphi 0, %s38
    %s39 = sphi 0, %s36
    %s40 = sphi 0, %s39
    %s56 = sphi 0, %s40
    %s62 = sphi 0, %s64
    %s65 = sphi 0, %s62
    %s66 = sphi 0, %s65
    %s82 = sphi 0, %s66
    %s86 = sphi 0, %s86
    %s88 = sphi 0, %s86
    %s89 = sphi 0, %s88
    %s103 = sphi 0, %s89
    %s107 = sphi 0, %s107
    %s109 = sphi 0, %s107
    %s110 = sphi 0, %s109
    %s124 = sphi 0, %s110
    %s128 = sphi 0, %s128
    %s130 = sphi 0, %s128
    %s131 = sphi 0, %s130
    %s145 = sphi 0, %s131
    %s149 = sphi 0, %s149
    %s151 = sphi 0, %s149
    %s152 = sphi 0, %s151
    %s166 = sphi 0, %s152
    %s174 = sphi 0, %s176
    %s177 = sphi 0, %s174
    %s178 = sphi 0, %s177
    %s194 = sphi 0, %s178
  $region4: #{enc_from_rgb_forward.1} parent=0 // loop_header_branch
    %15 = sbr.rel (%p13) target = $region8
  $region5: #{enc_from_rgb_forward.1} parent=0 // loop_body
    %s17 = ssub.s32 %s12, 1
    %s18 = ssub.s32 %s12, 2
    %s25 = sadd.s32 1, %s20
    %p26 = scmp.ge.s32.totalorder %s25, 2
    %s27 = scalar_select %p26, 0, %s25
    %s28 = sadd.s32 1, %s19
    %s29 = scalar_select %p26, %s28, %s19
    %p30 = scmp.ge.s32.totalorder %s29, 2
    %s31 = scalar_select %p30, 0, %s29
    %s32 = ssub.s32 %s19, %s31
    %s33 = ssub.s32 %s20, %s27
    %s34 = sor.u32 %s32, %s33
    %p35 = scmp.eq.s32.totalorder %s34, 0
    %s37 = sadd.s32 %s36, 1
    %s38 = scalar_select %p35, %s36, %s37
    %p41 = pneg %p35
    %p42 = scmp.eq.s32.totalorder %s12, 3
    %p43 = por %p41, %p42
    %p44 = scmp.ne.s32.totalorder %s36, %s39
    %p45 = scmp.eq.s32.totalorder %s12, 0
    %p46 = por %p44, %p45
    %p47 = scmp.ne.s32.totalorder %s36, %s39
    %p48 = scmp.eq.s32.totalorder %s17, 3
    %p49 = por %p47, %p48
    %p50 = scmp.ne.s32.totalorder %s39, %s40
    %p51 = scmp.eq.s32.totalorder %s17, 0
    %p52 = por %p50, %p51
    %p53 = scmp.ne.s32.totalorder %s39, %s40
    %p54 = scmp.eq.s32.totalorder %s18, 3
    %p55 = por %p53, %p54
    %p57 = scmp.ne.s32.totalorder %s40, %s56
    %p58 = scmp.eq.s32.totalorder %s18, 0
    %p59 = por %p57, %p58
    %s60 = ssub.s32 %s20, %s27
    %p61 = scmp.eq.s32.totalorder %s60, 0
    %s63 = sadd.s32 %s62, 1
    %s64 = scalar_select %p61, %s62, %s63
    %p67 = pneg %p61
    %p68 = scmp.eq.s32.totalorder %s12, 3
    %p69 = por %p67, %p68
    %p70 = scmp.ne.s32.totalorder %s62, %s65
    %p71 = scmp.eq.s32.totalorder %s12, 0
    %p72 = por %p70, %p71
    %p73 = scmp.ne.s32.totalorder %s62, %s65
    %p74 = scmp.eq.s32.totalorder %s17, 3
    %p75 = por %p73, %p74
    %p76 = scmp.ne.s32.totalorder %s65, %s66
    %p77 = scmp.eq.s32.totalorder %s17, 0
    %p78 = por %p76, %p77
    %p79 = scmp.ne.s32.totalorder %s65, %s66
    %p80 = scmp.eq.s32.totalorder %s18, 3
    %p81 = por %p79, %p80
    %p83 = scmp.ne.s32.totalorder %s66, %s82
    %p84 = scmp.eq.s32.totalorder %s18, 0
    %p85 = por %p83, %p84
    %s87 = sadd.s32 %s86, 1
    %p90 = scmp.eq.s32.totalorder %s12, 3
    %p91 = scmp.ne.s32.totalorder %s86, %s88
    %p92 = scmp.eq.s32.totalorder %s12, 0
    %p93 = por %p91, %p92
    %p94 = scmp.ne.s32.totalorder %s86, %s88
    %p95 = scmp.eq.s32.totalorder %s17, 3
    %p96 = por %p94, %p95
    %p97 = scmp.ne.s32.totalorder %s88, %s89
    %p98 = scmp.eq.s32.totalorder %s17, 0
    %p99 = por %p97, %p98
    %p100 = scmp.ne.s32.totalorder %s88, %s89
    %p101 = scmp.eq.s32.totalorder %s18, 3
    %p102 = por %p100, %p101
    %p104 = scmp.ne.s32.totalorder %s89, %s103
    %p105 = scmp.eq.s32.totalorder %s18, 0
    %p106 = por %p104, %p105
    %s108 = sadd.s32 %s107, 1
    %p111 = scmp.eq.s32.totalorder %s12, 3
    %p112 = scmp.ne.s32.totalorder %s107, %s109
    %p113 = scmp.eq.s32.totalorder %s12, 0
    %p114 = por %p112, %p113
    %p115 = scmp.ne.s32.totalorder %s107, %s109
    %p116 = scmp.eq.s32.totalorder %s17, 3
    %p117 = por %p115, %p116
    %p118 = scmp.ne.s32.totalorder %s109, %s110
    %p119 = scmp.eq.s32.totalorder %s17, 0
    %p120 = por %p118, %p119
    %p121 = scmp.ne.s32.totalorder %s109, %s110
    %p122 = scmp.eq.s32.totalorder %s18, 3
    %p123 = por %p121, %p122
    %p125 = scmp.ne.s32.totalorder %s110, %s124
    %p126 = scmp.eq.s32.totalorder %s18, 0
    %p127 = por %p125, %p126
    %s129 = sadd.s32 %s128, 1
    %p132 = scmp.eq.s32.totalorder %s12, 3
    %p133 = scmp.ne.s32.totalorder %s128, %s130
    %p134 = scmp.eq.s32.totalorder %s12, 0
    %p135 = por %p133, %p134
    %p136 = scmp.ne.s32.totalorder %s128, %s130
    %p137 = scmp.eq.s32.totalorder %s17, 3
    %p138 = por %p136, %p137
    %p139 = scmp.ne.s32.totalorder %s130, %s131
    %p140 = scmp.eq.s32.totalorder %s17, 0
    %p141 = por %p139, %p140
    %p142 = scmp.ne.s32.totalorder %s130, %s131
    %p143 = scmp.eq.s32.totalorder %s18, 3
    %p144 = por %p142, %p143
    %p146 = scmp.ne.s32.totalorder %s131, %s145
    %p147 = scmp.eq.s32.totalorder %s18, 0
    %p148 = por %p146, %p147
    %s150 = sadd.s32 %s149, 1
    %p153 = scmp.eq.s32.totalorder %s12, 3
    %p154 = scmp.ne.s32.totalorder %s149, %s151
    %p155 = scmp.eq.s32.totalorder %s12, 0
    %p156 = por %p154, %p155
    %p157 = scmp.ne.s32.totalorder %s149, %s151
    %p158 = scmp.eq.s32.totalorder %s17, 3
    %p159 = por %p157, %p158
    %p160 = scmp.ne.s32.totalorder %s151, %s152
    %p161 = scmp.eq.s32.totalorder %s17, 0
    %p162 = por %p160, %p161
    %p163 = scmp.ne.s32.totalorder %s151, %s152
    %p164 = scmp.eq.s32.totalorder %s18, 3
    %p165 = por %p163, %p164
    %p167 = scmp.ne.s32.totalorder %s152, %s166
    %p168 = scmp.eq.s32.totalorder %s18, 0
    %p169 = por %p167, %p168
    %s170 = ssub.s32 %s19, %s31
    %s171 = ssub.s32 %s20, %s27
    %s172 = sor.u32 %s170, %s171
    %p173 = scmp.eq.s32.totalorder %s172, 0
    %s175 = sadd.s32 %s174, 1
    %s176 = scalar_select %p173, %s174, %s175
    %p179 = pneg %p173
    %p180 = scmp.eq.s32.totalorder %s12, 3
    %p181 = por %p179, %p180
    %p182 = scmp.ne.s32.totalorder %s174, %s177
    %p183 = scmp.eq.s32.totalorder %s12, 0
    %p184 = por %p182, %p183
    %p185 = scmp.ne.s32.totalorder %s174, %s177
    %p186 = scmp.eq.s32.totalorder %s17, 3
    %p187 = por %p185, %p186
    %p188 = scmp.ne.s32.totalorder %s177, %s178
    %p189 = scmp.eq.s32.totalorder %s17, 0
    %p190 = por %p188, %p189
    %p191 = scmp.ne.s32.totalorder %s177, %s178
    %p192 = scmp.eq.s32.totalorder %s18, 3
    %p193 = por %p191, %p192
    %p195 = scmp.ne.s32.totalorder %s178, %s194
    %p196 = scmp.eq.s32.totalorder %s18, 0
    %p197 = por %p195, %p196
    %p198 = scmp.le.s32.totalorder 1, %s12
    %p199 = scmp.lt.s32.totalorder %s12, 5
    %p200 = pnand %p198, %p199
    %p201 = pneg %p200
    // Predicated region
    $region9: #{enc_from_rgb_forward.1} parent=5 // pred_check
      _
    $region10: #{enc_from_rgb_forward.1} parent=5 // pred_check_branch
      %203 = sbr.rel (%p200) target = $region12
    $region11: #{enc_from_rgb_forward.1} parent=5 // pred_region
      %s204 = ssub.s32 %s12, 1
      // Predicated region
      $region13: #{enc_from_rgb_forward.1} parent=11 // pred_check
        %p205 = pneg %p99
      $region14: #{enc_from_rgb_forward.1} parent=11 // pred_check_branch
        %207 = sbr.rel (%p205) target = $region16
      $region15: #{enc_from_rgb_forward.1} parent=11 // pred_region
        _
      $region16: #{enc_from_rgb_forward.1} parent=11 // pred_fallthru
        _
      // Predicated region
      $region17: #{enc_from_rgb_forward.1} parent=11 // pred_check
        %p208 = pneg %p120
      $region18: #{enc_from_rgb_forward.1} parent=11 // pred_check_branch
        %210 = sbr.rel (%p208) target = $region20
      $region19: #{enc_from_rgb_forward.1} parent=11 // pred_region
        _
      $region20: #{enc_from_rgb_forward.1} parent=11 // pred_fallthru
        _
      // Predicated region
      $region21: #{enc_from_rgb_forward.1} parent=11 // pred_check
        %p211 = pneg %p141
      $region22: #{enc_from_rgb_forward.1} parent=11 // pred_check_branch
        %213 = sbr.rel (%p211) target = $region24
      $region23: #{enc_from_rgb_forward.1} parent=11 // pred_region
        _
      $region24: #{enc_from_rgb_forward.1} parent=11 // pred_fallthru
        _
      // Predicated region
      $region25: #{enc_from_rgb_forward.1} parent=11 // pred_check
        %p214 = pneg %p162
      $region26: #{enc_from_rgb_forward.1} parent=11 // pred_check_branch
        %216 = sbr.rel (%p214) target = $region28
      $region27: #{enc_from_rgb_forward.1} parent=11 // pred_region
        _
      $region28: #{enc_from_rgb_forward.1} parent=11 // pred_fallthru
        _
    $region12: #{enc_from_rgb_forward.1} parent=5 // pred_fallthru
      _
    %p217 = scmp.lt.s32.totalorder %s12, 4
    // Predicated region
    $region29: #{enc_from_rgb_forward.1} parent=5 // pred_check
      %p218 = pneg %p217
    $region30: #{enc_from_rgb_forward.1} parent=5 // pred_check_branch
      %220 = sbr.rel (%p218) target = $region32
    $region31: #{enc_from_rgb_forward.1} parent=5 // pred_region
      // Predicated region
      $region33: #{enc_from_rgb_forward.1} parent=31 // pred_check
        %p221 = pneg %p46
      $region34: #{enc_from_rgb_forward.1} parent=31 // pred_check_branch
        %223 = sbr.rel (%p221) target = $region36
      $region35: #{enc_from_rgb_forward.1} parent=31 // pred_region
        %p224 = scmp.lt.s32.totalorder %s19, 1
        %s225 = scalar_select %p224, %s19, 1
        %p226 = scmp.lt.s32.totalorder %s20, 1
        %s227 = scalar_select %p226, %s20, 1
        %s228 = smul.addr %s227, 2
        %s229 = smul.addr %s225, 4
        %s230 = sadd.s32 %s228, %s229
        %s231 = smul.addr %s230, 4
        %s232 = scalar_lea.vmem %s0, %s231
      $region36: #{enc_from_rgb_forward.1} parent=31 // pred_fallthru
        _
      // Predicated region
      $region37: #{enc_from_rgb_forward.1} parent=31 // pred_check
        %p233 = pneg %p72
      $region38: #{enc_from_rgb_forward.1} parent=31 // pred_check_branch
        %235 = sbr.rel (%p233) target = $region40
      $region39: #{enc_from_rgb_forward.1} parent=31 // pred_region
        %p236 = scmp.lt.s32.totalorder %s20, 1
        %s237 = scalar_select %p236, %s20, 1
        %s238 = smul.addr %s237, 2
        %s239 = scalar_lea.vmem %s1, %s238
      $region40: #{enc_from_rgb_forward.1} parent=31 // pred_fallthru
        _
    $region32: #{enc_from_rgb_forward.1} parent=5 // pred_fallthru
      _
    %p240 = scmp.le.s32.totalorder 1, %s12
    %p241 = scmp.lt.s32.totalorder %s12, 5
    %p242 = pnand %p240, %p241
    %p243 = pneg %p242
    // Predicated region
    $region41: #{enc_from_rgb_forward.1} parent=5 // pred_check
      _
    $region42: #{enc_from_rgb_forward.1} parent=5 // pred_check_branch
      %245 = sbr.rel (%p242) target = $region44
    $region43: #{enc_from_rgb_forward.1} parent=5 // pred_region
      %s246 = ssub.s32 %s12, 1
      %p247 = scmp.lt.s32.totalorder %s21, 1
      %s248 = scalar_select %p247, %s21, 1
      %p249 = scmp.lt.s32.totalorder %s22, 1
      %s250 = scalar_select %p249, %s22, 1
      %s251 = smul.addr %s250, 2
      %s252 = smul.addr %s248, 4
      %s253 = sadd.s32 %s251, %s252
      %s254 = smul.addr %s253, 4
      %s255 = scalar_lea.vmem %s0, %s254
      %p256 = pneg %p52
      %p257 = pneg %p49
      %p258 = scmp.lt.s32.totalorder %s22, 1
      %s259 = scalar_select %p258, %s22, 1
      %s260 = smul.addr %s259, 2
      %s261 = scalar_lea.vmem %s1, %s260
      %p262 = pneg %p78
      %p263 = pneg %p75
      %p264 = pneg %p99
      %p265 = pneg %p96
      %p266 = pneg %p120
      %p267 = pneg %p117
      %p268 = pneg %p141
      %p269 = pneg %p138
      %p270 = pneg %p162
      %p271 = pneg %p159
      %p272 = pneg %p190
      %p273 = pneg %p187
      %p274 = scmp.lt.s32.totalorder %s21, 1
      %s275 = scalar_select %p274, %s21, 1
      %p276 = scmp.lt.s32.totalorder %s22, 1
      %s277 = scalar_select %p276, %s22, 1
      %s278 = smul.addr %s277, 8
      %s279 = smul.addr %s275, 16
      %s280 = sadd.s32 %s278, %s279
      %s281 = smul.addr %s280, 8
      %s282 = scalar_lea.vmem %s6, %s281
      %p283 = scmp.lt.s32.totalorder %s21, 1
      %s284 = scalar_select %p283, %s21, 1
      %p285 = scmp.lt.s32.totalorder %s22, 1
      %s286 = scalar_select %p285, %s22, 1
      %s287 = smul.addr %s286, 2
      %s288 = smul.addr %s284, 4
      %s289 = sadd.s32 %s287, %s288
      %s290 = smul.addr %s289, 4
      %s291 = scalar_lea.vmem %s0, %s290
      %p292 = scmp.lt.s32.totalorder %s22, 1
      %s293 = scalar_select %p292, %s22, 1
      %s294 = smul.addr %s293, 2
      %s295 = scalar_lea.vmem %s1, %s294
      %p296 = scmp.lt.s32.totalorder %s21, 1
      %s297 = scalar_select %p296, %s21, 1
      %p298 = scmp.lt.s32.totalorder %s22, 1
      %s299 = scalar_select %p298, %s22, 1
      %s300 = smul.addr %s299, 8
      %s301 = smul.addr %s297, 16
      %s302 = sadd.s32 %s300, %s301
      %s303 = smul.addr %s302, 8
      %s304 = scalar_lea.vmem %s6, %s303
      %v306 = vld [vmem:[%s291] sm:$0xff]
      %v307 = vld [vmem:[%s2] sm:$0xff]
      %v308 = vld [vmem:[%s2 + $0x8] sm:$0xff]
      %v309 = vld [vmem:[%s2 + $0x10] sm:$0xff]
      %v310 = vld [vmem:[%s2 + $0x18] sm:$0xff]
      %v311 = vld [vmem:[%s295] sm:$0x3]
      %313 = vset.pattern.permute.xlu0 0
      %314 = vperm.xlu0 %313, %v307
      %v315 = vpop.permute.xlu0 %314
      %318 = vset.pattern.permute.xlu0 0
      %319 = vperm.xlu0 %318, %v308
      %v320 = vpop.permute.xlu0 %319
      %323 = vset.pattern.permute.xlu0 0
      %324 = vperm.xlu0 %323, %v309
      %v325 = vpop.permute.xlu0 %324
      %328 = vset.pattern.permute.xlu0 0
      %329 = vperm.xlu0 %328, %v310
      %v330 = vpop.permute.xlu0 %329
      %v333 = vperm.slane %v306, 0
      %v334 = vperm.slane %v306, 4
      %v337 = vperm.slane %v333, 0
      %v338 = vperm.slane %v334, 0
      %v339 = vmul.f32 %v315, %v337
      %v340 = vmul.f32 %v315, %v338
      %v341 = vmul.f32 %v320, %v337
      %v342 = vmul.f32 %v320, %v338
      %v343 = vmul.f32 %v325, %v337
      %v344 = vmul.f32 %v325, %v338
      %v345 = vmul.f32 %v330, %v337
      %v346 = vmul.f32 %v330, %v338
      %347 = vset.pattern.permute.xlu0 1
      %348 = vperm.xlu0 %347, %v307
      %v349 = vpop.permute.xlu0 %348
      %351 = vset.pattern.permute.xlu0 1
      %352 = vperm.xlu0 %351, %v308
      %v353 = vpop.permute.xlu0 %352
      %355 = vset.pattern.permute.xlu0 1
      %356 = vperm.xlu0 %355, %v309
      %v357 = vpop.permute.xlu0 %356
      %359 = vset.pattern.permute.xlu0 1
      %360 = vperm.xlu0 %359, %v310
      %v361 = vpop.permute.xlu0 %360
      %v363 = vperm.slane %v306, 1
      %v364 = vperm.slane %v306, 5
      %v367 = vperm.slane %v363, 1
      %v368 = vperm.slane %v364, 1
      %v369 = vmul.f32 %v349, %v367
      %v370 = vmul.f32 %v349, %v368
      %v371 = vmul.f32 %v353, %v367
      %v372 = vmul.f32 %v353, %v368
      %v373 = vmul.f32 %v357, %v367
      %v374 = vmul.f32 %v357, %v368
      %v375 = vmul.f32 %v361, %v367
      %v376 = vmul.f32 %v361, %v368
      %v377 = vadd.f32 %v339, %v369
      %v378 = vadd.f32 %v340, %v370
      %v379 = vadd.f32 %v341, %v371
      %v380 = vadd.f32 %v342, %v372
      %v381 = vadd.f32 %v343, %v373
      %v382 = vadd.f32 %v344, %v374
      %v383 = vadd.f32 %v345, %v375
      %v384 = vadd.f32 %v346, %v376
      %385 = vset.pattern.permute.xlu0 2
      %386 = vperm.xlu0 %385, %v307
      %v387 = vpop.permute.xlu0 %386
      %389 = vset.pattern.permute.xlu0 2
      %390 = vperm.xlu0 %389, %v308
      %v391 = vpop.permute.xlu0 %390
      %393 = vset.pattern.permute.xlu0 2
      %394 = vperm.xlu0 %393, %v309
      %v395 = vpop.permute.xlu0 %394
      %397 = vset.pattern.permute.xlu0 2
      %398 = vperm.xlu0 %397, %v310
      %v399 = vpop.permute.xlu0 %398
      %v401 = vperm.slane %v306, 2
      %v402 = vperm.slane %v306, 6
      %v405 = vperm.slane %v401, 2
      %v406 = vperm.slane %v402, 2
      %v407 = vmul.f32 %v387, %v405
      %v408 = vmul.f32 %v387, %v406
      %v409 = vmul.f32 %v391, %v405
      %v410 = vmul.f32 %v391, %v406
      %v411 = vmul.f32 %v395, %v405
      %v412 = vmul.f32 %v395, %v406
      %v413 = vmul.f32 %v399, %v405
      %v414 = vmul.f32 %v399, %v406
      %v415 = vadd.f32 %v377, %v407
      %v416 = vadd.f32 %v378, %v408
      %v417 = vadd.f32 %v379, %v409
      %v418 = vadd.f32 %v380, %v410
      %v419 = vadd.f32 %v381, %v411
      %v420 = vadd.f32 %v382, %v412
      %v421 = vadd.f32 %v383, %v413
      %v422 = vadd.f32 %v384, %v414
      %423 = vset.pattern.permute.xlu0 3
      %424 = vperm.xlu0 %423, %v307
      %v425 = vpop.permute.xlu0 %424
      %427 = vset.pattern.permute.xlu0 3
      %428 = vperm.xlu0 %427, %v308
      %v429 = vpop.permute.xlu0 %428
      %431 = vset.pattern.permute.xlu0 3
      %432 = vperm.xlu0 %431, %v309
      %v433 = vpop.permute.xlu0 %432
      %435 = vset.pattern.permute.xlu0 3
      %436 = vperm.xlu0 %435, %v310
      %v437 = vpop.permute.xlu0 %436
      %v439 = vperm.slane %v306, 3
      %v440 = vperm.slane %v306, 7
      %v443 = vperm.slane %v439, 3
      %v444 = vperm.slane %v440, 3
      %v445 = vmul.f32 %v425, %v443
      %v446 = vmul.f32 %v425, %v444
      %v447 = vmul.f32 %v429, %v443
      %v448 = vmul.f32 %v429, %v444
      %v449 = vmul.f32 %v433, %v443
      %v450 = vmul.f32 %v433, %v444
      %v451 = vmul.f32 %v437, %v443
      %v452 = vmul.f32 %v437, %v444
      %v453 = vadd.f32 %v415, %v445
      %v454 = vadd.f32 %v416, %v446
      %v455 = vadd.f32 %v417, %v447
      %v456 = vadd.f32 %v418, %v448
      %v457 = vadd.f32 %v419, %v449
      %v458 = vadd.f32 %v420, %v450
      %v459 = vadd.f32 %v421, %v451
      %v460 = vadd.f32 %v422, %v452
      %v461 = vld [vmem:[%s3] sm:$0xff]
      %v462 = vld [vmem:[%s3 + $0x8] sm:$0xff]
      %v463 = vld [vmem:[%s3 + $0x10] sm:$0xff]
      %v464 = vld [vmem:[%s3 + $0x18] sm:$0xff]
      %466 = vset.pattern.permute.xlu0 0
      %467 = vperm.xlu0 %466, %v461
      %v468 = vpop.permute.xlu0 %467
      %471 = vset.pattern.permute.xlu0 0
      %472 = vperm.xlu0 %471, %v462
      %v473 = vpop.permute.xlu0 %472
      %476 = vset.pattern.permute.xlu0 0
      %477 = vperm.xlu0 %476, %v463
      %v478 = vpop.permute.xlu0 %477
      %481 = vset.pattern.permute.xlu0 0
      %482 = vperm.xlu0 %481, %v464
      %v483 = vpop.permute.xlu0 %482
      %v485 = vadd.f32 %v453, %v468
      %v486 = vadd.f32 %v454, %v468
      %v487 = vadd.f32 %v455, %v473
      %v488 = vadd.f32 %v456, %v473
      %v489 = vadd.f32 %v457, %v478
      %v490 = vadd.f32 %v458, %v478
      %v491 = vadd.f32 %v459, %v483
      %v492 = vadd.f32 %v460, %v483
      %vm493 = vcmp.ge.f32.partialorder %v485, 0.0
      %vm494 = vcmp.ge.f32.partialorder %v486, 0.0
      %vm495 = vcmp.ge.f32.partialorder %v487, 0.0
      %vm496 = vcmp.ge.f32.partialorder %v488, 0.0
      %vm497 = vcmp.ge.f32.partialorder %v489, 0.0
      %vm498 = vcmp.ge.f32.partialorder %v490, 0.0
      %vm499 = vcmp.ge.f32.partialorder %v491, 0.0
      %vm500 = vcmp.ge.f32.partialorder %v492, 0.0
      %v501 = vmul.f32 %v311, 0.2
      %v503 = vperm.slane %v311, 0
      %v504 = vperm.slane %v311, 1
      %v508 = vperm.slane %v501, 0
      %v509 = vperm.slane %v501, 1
      %v512 = vsel %vm493, %v503, %v508
      %v513 = vsel %vm494, %v504, %v509
      %v514 = vsel %vm495, %v503, %v508
      %v515 = vsel %vm496, %v504, %v509
      %v516 = vsel %vm497, %v503, %v508
      %v517 = vsel %vm498, %v504, %v509
      %v518 = vsel %vm499, %v503, %v508
      %v519 = vsel %vm500, %v504, %v509
      %v520 = vmul.f32 %v512, %v485
      %v521 = vmul.f32 %v513, %v486
      %v522 = vmul.f32 %v514, %v487
      %v523 = vmul.f32 %v515, %v488
      %v524 = vmul.f32 %v516, %v489
      %v525 = vmul.f32 %v517, %v490
      %v526 = vmul.f32 %v518, %v491
      %v527 = vmul.f32 %v519, %v492
      %v528 = vpack.c.bf16 %v521, %v520
      %v529 = vpack.c.bf16 %v523, %v522
      %v530 = vpack.c.bf16 %v525, %v524
      %v531 = vpack.c.bf16 %v527, %v526
      %v536 = vunpack.c.l.b16 %v528
      %v537 = vunpack.c.h.b16 %v528
      %v538 = vunpack.c.l.b16 %v529
      %v539 = vunpack.c.h.b16 %v529
      %v540 = vunpack.c.l.b16 %v530
      %v541 = vunpack.c.h.b16 %v530
      %v542 = vunpack.c.l.b16 %v531
      %v543 = vunpack.c.h.b16 %v531
      %v544 = vpack.c.b16 %v538, %v536
      %v545 = vpack.c.b16 %v539, %v537
      %v546 = vpack.c.b16 %v542, %v540
      %v547 = vpack.c.b16 %v543, %v541
      %552 = vrot.lane.b32.xlu0 %v544, 127
      %v553 = vpop.permute.xlu0 %552
      %554 = vrot.lane.b32.xlu0 %v545, 127
      %v555 = vpop.permute.xlu0 %554
      %556 = vrot.lane.b32.xlu0 %v546, 127
      %v557 = vpop.permute.xlu0 %556
      %558 = vrot.lane.b32.xlu0 %v547, 127
      %v559 = vpop.permute.xlu0 %558
      %vm560 = vcmask 1039360
      %v561 = vsel %vm560, %v553, %v555
      %v562 = vsel %vm560, %v557, %v559
      %567 = vrot.lane.b32.xlu0 %v544, 126
      %v568 = vpop.permute.xlu0 %567
      %569 = vrot.lane.b32.xlu0 %v545, 126
      %v570 = vpop.permute.xlu0 %569
      %571 = vrot.lane.b32.xlu0 %v546, 126
      %v572 = vpop.permute.xlu0 %571
      %573 = vrot.lane.b32.xlu0 %v547, 126
      %v574 = vpop.permute.xlu0 %573
      %vm575 = vcmask 1031168
      %v576 = vsel %vm575, %v568, %v570
      %v577 = vsel %vm575, %v572, %v574
      %v582 = vld [vmem:[%s4] sm:$0xf]
      %v583 = vld [vmem:[%s4 + $0x4] sm:$0xf]
      %v584 = vld [vmem:[%s4 + $0x8] sm:$0xf]
      %v585 = vld [vmem:[%s4 + $0xc] sm:$0xf]
      %s586 = scalar_lea.vmem %s4, 16
      %v587 = vld [vmem:[%s586] sm:$0xf]
      %v588 = vld [vmem:[%s586 + $0x4] sm:$0xf]
      %v589 = vld [vmem:[%s586 + $0x8] sm:$0xf]
      %v590 = vld [vmem:[%s586 + $0xc] sm:$0xf]
      %v595 = vunpack.c.l.b16 %v587
      %v596 = vunpack.c.l.b16 %v588
      %v597 = vunpack.c.l.b16 %v589
      %v598 = vunpack.c.l.b16 %v590
      %v599 = vpack.c.b16 %v596, %v595
      %v600 = vpack.c.b16 %v598, %v597
      %601 = vrot.lane.b32.xlu0 %v544, 110
      %v602 = vpop.permute.xlu0 %601
      %603 = vrot.lane.b32.xlu0 %v545, 110
      %v604 = vpop.permute.xlu0 %603
      %605 = vrot.lane.b32.xlu0 %v546, 110
      %v606 = vpop.permute.xlu0 %605
      %607 = vrot.lane.b32.xlu0 %v547, 110
      %v608 = vpop.permute.xlu0 %607
      %609 = vrot.lane.b32.xlu0 %v561, 110
      %v610 = vpop.permute.xlu0 %609
      %611 = vrot.lane.b32.xlu0 %v555, 110
      %v612 = vpop.permute.xlu0 %611
      %613 = vrot.lane.b32.xlu0 %v562, 110
      %v614 = vpop.permute.xlu0 %613
      %615 = vrot.lane.b32.xlu0 %v559, 110
      %v616 = vpop.permute.xlu0 %615
      %617 = vrot.lane.b32.xlu0 %v576, 110
      %v618 = vpop.permute.xlu0 %617
      %619 = vrot.lane.b32.xlu0 %v570, 110
      %v620 = vpop.permute.xlu0 %619
      %621 = vrot.lane.b32.xlu0 %v577, 110
      %v622 = vpop.permute.xlu0 %621
      %623 = vrot.lane.b32.xlu0 %v574, 110
      %v624 = vpop.permute.xlu0 %623
      %vm625 = vcmask 900096
      %v626 = vsel %vm625, %v602, %v604
      %v627 = vsel %vm625, %v606, %v608
      %v628 = vsel %vm625, %v610, %v612
      %v629 = vsel %vm625, %v614, %v616
      %v630 = vsel %vm625, %v618, %v620
      %v631 = vsel %vm625, %v622, %v624
      %vm644 = vcmask 785408
      %v646 = vsel %vm644, %v599, 0
      %v649 = vsel %vm644, %v600, 0
      %651 = vmatpush.bf16.msra.mxu0 0
      %652 = vmatpush.bf16.msra.mxu0 0
      %653 = vmatpush.bf16.msra.mxu0 %v631
      %654 = vmatpush.bf16.msra.mxu0 %v630
      %655 = vmatpush.bf16.msra.mxu0 %v629
      %656 = vmatpush.bf16.msra.mxu0 %v628
      %657 = vmatpush.bf16.msra.mxu0 %v627
      %658 = vmatpush.bf16.msra.mxu0 %v626
      %659 = vmatmul.bf16.gmra.mxu0 %v646
      %v660 = vpop.f32.mrf.mxu0
      %v661 = vadd.f32 0.0, %v660
      %v662 = vpop.f32.mrf.mxu0
      %v663 = vadd.f32 0.0, %v662
      %664 = vmatmul.bf16.gmra.mxu0 %v649
      %v665 = vpop.f32.mrf.mxu0
      %v666 = vadd.f32 0.0, %v665
      %v667 = vpop.f32.mrf.mxu0
      %v668 = vadd.f32 0.0, %v667
      %669 = vdwg.mxu0
      %670 = vmatpush.bf16.msra.mxu0 0
      %671 = vmatpush.bf16.msra.mxu0 0
      %672 = vmatpush.bf16.msra.mxu0 %v624
      %673 = vmatpush.bf16.msra.mxu0 %v620
      %674 = vmatpush.bf16.msra.mxu0 %v616
      %675 = vmatpush.bf16.msra.mxu0 %v612
      %676 = vmatpush.bf16.msra.mxu0 %v608
      %677 = vmatpush.bf16.msra.mxu0 %v604
      %678 = vmatmul.bf16.gmra.mxu0 %v646
      %v679 = vpop.f32.mrf.mxu0
      %v680 = vadd.f32 0.0, %v679
      %v681 = vpop.f32.mrf.mxu0
      %v682 = vadd.f32 0.0, %v681
      %683 = vmatmul.bf16.gmra.mxu0 %v649
      %v684 = vpop.f32.mrf.mxu0
      %v685 = vadd.f32 0.0, %v684
      %v686 = vpop.f32.mrf.mxu0
      %v687 = vadd.f32 0.0, %v686
      %688 = vdwg.mxu0
      %v693 = vunpack.c.l.b16 %v582
      %v694 = vunpack.c.l.b16 %v583
      %v695 = vunpack.c.l.b16 %v584
      %v696 = vunpack.c.l.b16 %v585
      %v697 = vpack.c.b16 %v694, %v693
      %v698 = vpack.c.b16 %v696, %v695
      %v700 = vsel %vm644, %v697, 0
      %v703 = vsel %vm644, %v698, 0
      %705 = vmatpush.bf16.msra.mxu0 0
      %706 = vmatpush.bf16.msra.mxu0 0
      %707 = vmatpush.bf16.msra.mxu0 %v577
      %708 = vmatpush.bf16.msra.mxu0 %v576
      %709 = vmatpush.bf16.msra.mxu0 %v562
      %710 = vmatpush.bf16.msra.mxu0 %v561
      %711 = vmatpush.bf16.msra.mxu0 %v546
      %712 = vmatpush.bf16.msra.mxu0 %v544
      %713 = vmatmul.bf16.gmra.mxu0 %v700
      %v714 = vpop.f32.mrf.mxu0
      %v715 = vadd.f32 %v661, %v714
      %v716 = vpop.f32.mrf.mxu0
      %v717 = vadd.f32 %v663, %v716
      %718 = vmatmul.bf16.gmra.mxu0 %v703
      %v719 = vpop.f32.mrf.mxu0
      %v720 = vadd.f32 %v666, %v719
      %v721 = vpop.f32.mrf.mxu0
      %v722 = vadd.f32 %v668, %v721
      %723 = vdwg.mxu0
      %724 = vmatpush.bf16.msra.mxu0 0
      %725 = vmatpush.bf16.msra.mxu0 0
      %726 = vmatpush.bf16.msra.mxu0 %v574
      %727 = vmatpush.bf16.msra.mxu0 %v570
      %728 = vmatpush.bf16.msra.mxu0 %v559
      %729 = vmatpush.bf16.msra.mxu0 %v555
      %730 = vmatpush.bf16.msra.mxu0 %v547
      %731 = vmatpush.bf16.msra.mxu0 %v545
      %732 = vmatmul.bf16.gmra.mxu0 %v700
      %v733 = vpop.f32.mrf.mxu0
      %v734 = vadd.f32 %v680, %v733
      %v735 = vpop.f32.mrf.mxu0
      %v736 = vadd.f32 %v682, %v735
      %737 = vmatmul.bf16.gmra.mxu0 %v703
      %v738 = vpop.f32.mrf.mxu0
      %v739 = vadd.f32 %v685, %v738
      %v740 = vpop.f32.mrf.mxu0
      %v741 = vadd.f32 %v687, %v740
      %742 = vdwg.mxu0
      %s743 = scalar_lea.vmem %s4, 32
      %v744 = vld [vmem:[%s743] sm:$0xf]
      %v745 = vld [vmem:[%s743 + $0x4] sm:$0xf]
      %v746 = vld [vmem:[%s743 + $0x8] sm:$0xf]
      %v747 = vld [vmem:[%s743 + $0xc] sm:$0xf]
      %v752 = vunpack.c.l.b16 %v744
      %v753 = vunpack.c.l.b16 %v745
      %v754 = vunpack.c.l.b16 %v746
      %v755 = vunpack.c.l.b16 %v747
      %v756 = vpack.c.b16 %v753, %v752
      %v757 = vpack.c.b16 %v755, %v754
      %758 = vrot.lane.b32.xlu0 %v544, 92
      %v759 = vpop.permute.xlu0 %758
      %760 = vrot.lane.b32.xlu0 %v545, 92
      %v761 = vpop.permute.xlu0 %760
      %762 = vrot.lane.b32.xlu0 %v546, 92
      %v763 = vpop.permute.xlu0 %762
      %764 = vrot.lane.b32.xlu0 %v547, 92
      %v765 = vpop.permute.xlu0 %764
      %766 = vrot.lane.b32.xlu0 %v561, 92
      %v767 = vpop.permute.xlu0 %766
      %768 = vrot.lane.b32.xlu0 %v555, 92
      %v769 = vpop.permute.xlu0 %768
      %770 = vrot.lane.b32.xlu0 %v562, 92
      %v771 = vpop.permute.xlu0 %770
      %772 = vrot.lane.b32.xlu0 %v559, 92
      %v773 = vpop.permute.xlu0 %772
      %774 = vrot.lane.b32.xlu0 %v576, 92
      %v775 = vpop.permute.xlu0 %774
      %776 = vrot.lane.b32.xlu0 %v570, 92
      %v777 = vpop.permute.xlu0 %776
      %778 = vrot.lane.b32.xlu0 %v577, 92
      %v779 = vpop.permute.xlu0 %778
      %780 = vrot.lane.b32.xlu0 %v574, 92
      %v781 = vpop.permute.xlu0 %780
      %vm782 = vcmask 752640
      %v783 = vsel %vm782, %v759, %v761
      %v784 = vsel %vm782, %v763, %v765
      %v785 = vsel %vm782, %v767, %v769
      %v786 = vsel %vm782, %v771, %v773
      %v787 = vsel %vm782, %v775, %v777
      %v788 = vsel %vm782, %v779, %v781
      %v802 = vsel %vm644, %v756, 0
      %v805 = vsel %vm644, %v757, 0
      %807 = vmatpush.bf16.msra.mxu0 0
      %808 = vmatpush.bf16.msra.mxu0 0
      %809 = vmatpush.bf16.msra.mxu0 %v788
      %810 = vmatpush.bf16.msra.mxu0 %v787
      %811 = vmatpush.bf16.msra.mxu0 %v786
      %812 = vmatpush.bf16.msra.mxu0 %v785
      %813 = vmatpush.bf16.msra.mxu0 %v784
      %814 = vmatpush.bf16.msra.mxu0 %v783
      %815 = vmatmul.bf16.gmra.mxu0 %v802
      %v816 = vpop.f32.mrf.mxu0
      %v817 = vadd.f32 0.0, %v816
      %v818 = vpop.f32.mrf.mxu0
      %v819 = vadd.f32 0.0, %v818
      %820 = vmatmul.bf16.gmra.mxu0 %v805
      %v821 = vpop.f32.mrf.mxu0
      %v822 = vadd.f32 0.0, %v821
      %v823 = vpop.f32.mrf.mxu0
      %v824 = vadd.f32 0.0, %v823
      %825 = vdwg.mxu0
      %826 = vmatpush.bf16.msra.mxu0 0
      %827 = vmatpush.bf16.msra.mxu0 0
      %828 = vmatpush.bf16.msra.mxu0 %v781
      %829 = vmatpush.bf16.msra.mxu0 %v777
      %830 = vmatpush.bf16.msra.mxu0 %v773
      %831 = vmatpush.bf16.msra.mxu0 %v769
      %832 = vmatpush.bf16.msra.mxu0 %v765
      %833 = vmatpush.bf16.msra.mxu0 %v761
      %834 = vmatmul.bf16.gmra.mxu0 %v802
      %v835 = vpop.f32.mrf.mxu0
      %v836 = vadd.f32 0.0, %v835
      %v837 = vpop.f32.mrf.mxu0
      %v838 = vadd.f32 0.0, %v837
      %839 = vmatmul.bf16.gmra.mxu0 %v805
      %v840 = vpop.f32.mrf.mxu0
      %v841 = vadd.f32 0.0, %v840
      %v842 = vpop.f32.mrf.mxu0
      %v843 = vadd.f32 0.0, %v842
      %844 = vdwg.mxu0
      %v845 = vadd.f32 %v715, %v817
      %v846 = vadd.f32 %v734, %v836
      %v847 = vadd.f32 %v717, %v819
      %v848 = vadd.f32 %v736, %v838
      %v849 = vadd.f32 %v720, %v822
      %v850 = vadd.f32 %v739, %v841
      %v851 = vadd.f32 %v722, %v824
      %v852 = vadd.f32 %v741, %v843
      %v853 = vld [vmem:[%s5] sm:$0xff]
      %v854 = vld [vmem:[%s5 + $0x8] sm:$0xff]
      %v855 = vld [vmem:[%s5 + $0x10] sm:$0xff]
      %v856 = vld [vmem:[%s5 + $0x18] sm:$0xff]
      %858 = vset.pattern.permute.xlu0 0
      %859 = vperm.xlu0 %858, %v853
      %v860 = vpop.permute.xlu0 %859
      %863 = vset.pattern.permute.xlu0 0
      %864 = vperm.xlu0 %863, %v854
      %v865 = vpop.permute.xlu0 %864
      %868 = vset.pattern.permute.xlu0 0
      %869 = vperm.xlu0 %868, %v855
      %v870 = vpop.permute.xlu0 %869
      %873 = vset.pattern.permute.xlu0 0
      %874 = vperm.xlu0 %873, %v856
      %v875 = vpop.permute.xlu0 %874
      %v877 = vadd.f32 %v845, %v860
      %v878 = vadd.f32 %v846, %v860
      %v879 = vadd.f32 %v847, %v865
      %v880 = vadd.f32 %v848, %v865
      %v881 = vadd.f32 %v849, %v870
      %v882 = vadd.f32 %v850, %v870
      %v883 = vadd.f32 %v851, %v875
      %v884 = vadd.f32 %v852, %v875
      %vm885 = vcmp.ge.f32.partialorder %v877, 0.0
      %vm886 = vcmp.ge.f32.partialorder %v878, 0.0
      %vm887 = vcmp.ge.f32.partialorder %v879, 0.0
      %vm888 = vcmp.ge.f32.partialorder %v880, 0.0
      %vm889 = vcmp.ge.f32.partialorder %v881, 0.0
      %vm890 = vcmp.ge.f32.partialorder %v882, 0.0
      %vm891 = vcmp.ge.f32.partialorder %v883, 0.0
      %vm892 = vcmp.ge.f32.partialorder %v884, 0.0
      %v893 = vsel %vm885, 1.4142135, 0.28284273
      %v894 = vsel %vm886, 1.4142135, 0.28284273
      %v895 = vsel %vm887, 1.4142135, 0.28284273
      %v896 = vsel %vm888, 1.4142135, 0.28284273
      %v897 = vsel %vm889, 1.4142135, 0.28284273
      %v898 = vsel %vm890, 1.4142135, 0.28284273
      %v899 = vsel %vm891, 1.4142135, 0.28284273
      %v900 = vsel %vm892, 1.4142135, 0.28284273
      %v901 = vmul.f32 %v893, %v877
      %v902 = vmul.f32 %v894, %v878
      %v903 = vmul.f32 %v895, %v879
      %v904 = vmul.f32 %v896, %v880
      %v905 = vmul.f32 %v897, %v881
      %v906 = vmul.f32 %v898, %v882
      %v907 = vmul.f32 %v899, %v883
      %v908 = vmul.f32 %v900, %v884
      %909 = vst [vmem:[%s304] sm:$0xff] %v901
      %vm910 = vcmask 130048
      %911 = vst.msk [vmem:[%s304 + $0x8] sm:$0xff] %vm910, %v902
      %912 = vst [vmem:[%s304 + $0x10] sm:$0xff] %v903
      %913 = vst.msk [vmem:[%s304 + $0x18] sm:$0xff] %vm910, %v904
      %914 = vst [vmem:[%s304 + $0x20] sm:$0xff] %v905
      %915 = vst.msk [vmem:[%s304 + $0x28] sm:$0xff] %vm910, %v906
      %916 = vst [vmem:[%s304 + $0x30] sm:$0xff] %v907
      %917 = vst.msk [vmem:[%s304 + $0x38] sm:$0xff] %vm910, %v908
      %p918 = scmp.lt.s32.totalorder %s21, 1
      %s919 = scalar_select %p918, %s21, 1
      %p920 = scmp.lt.s32.totalorder %s22, 1
      %s921 = scalar_select %p920, %s22, 1
      %s922 = smul.addr %s921, 8
      %s923 = smul.addr %s919, 16
      %s924 = sadd.s32 %s922, %s923
      %s925 = smul.addr %s924, 8
      %s926 = scalar_lea.vmem %s6, %s925
      // Predicated region
      $region45: #{enc_from_rgb_forward.1} parent=43 // pred_check
        %p927 = pneg %p187
      $region46: #{enc_from_rgb_forward.1} parent=43 // pred_check_branch
        %929 = sbr.rel (%p927) target = $region48
      $region47: #{enc_from_rgb_forward.1} parent=43 // pred_region
        _
      $region48: #{enc_from_rgb_forward.1} parent=43 // pred_fallthru
        _
    $region44: #{enc_from_rgb_forward.1} parent=5 // pred_fallthru
      _
    %p930 = scmp.le.s32.totalorder 2, %s12
    // Predicated region
    $region49: #{enc_from_rgb_forward.1} parent=5 // pred_check
      %p931 = pneg %p930
    $region50: #{enc_from_rgb_forward.1} parent=5 // pred_check_branch
      %933 = sbr.rel (%p931) target = $region52
    $region51: #{enc_from_rgb_forward.1} parent=5 // pred_region
      %s934 = ssub.s32 %s12, 2
      // Predicated region
      $region53: #{enc_from_rgb_forward.1} parent=51 // pred_check
        %p935 = pneg %p193
      $region54: #{enc_from_rgb_forward.1} parent=51 // pred_check_branch
        %937 = sbr.rel (%p935) target = $region56
      $region55: #{enc_from_rgb_forward.1} parent=51 // pred_region
        %p938 = scmp.lt.s32.totalorder %s23, 1
        %s939 = scalar_select %p938, %s23, 1
        %p940 = scmp.lt.s32.totalorder %s24, 1
        %s941 = scalar_select %p940, %s24, 1
        %s942 = smul.addr %s941, 8
        %s943 = smul.addr %s939, 16
        %s944 = sadd.s32 %s942, %s943
        %s945 = smul.addr %s944, 8
        %s946 = scalar_lea.vmem %s6, %s945
      $region56: #{enc_from_rgb_forward.1} parent=51 // pred_fallthru
        _
    $region52: #{enc_from_rgb_forward.1} parent=5 // pred_fallthru
      _
  $region6: #{enc_from_rgb_forward.1} parent=0 // loop_footer
    %s16 = sadd.s32 1, %s12
  $region7: #{enc_from_rgb_forward.1} parent=0 // loop_footer_branch
    %11 = sbr.rel target = $region3
  $region8: #{enc_from_rgb_forward.1} parent=0 // loop_exit
    _

</llo_original>
